<compile_context>
chip_gen: v5e
topology: v5e:2x2
jax: 0.10.0
libtpu: 0.0.40
codegen_flags: <defaults>
</compile_context>

<pallas_src>
import jax
import jax.numpy as jnp
from jax.experimental import pallas as pl
from jax.experimental.pallas import tpu as pltpu


def _round_up(x, m):
    return ((x + m - 1) // m) * m


# ---------------------------------------------------------------------------
# Kernel 1: fused embedding gather + demonstration merge + stand-in encoder.
# Grid = (B,), marked "parallel" (megacore / v7x two-TC friendly).
# ---------------------------------------------------------------------------
def _embed_encode_kernel(merged_ids_ref, mask_pos_ref,            # scalar prefetch (SMEM)
                         tab_hbm, attn_ref, w_enc_ref, b_enc_ref,  # inputs
                         hidden_ref, head_ref,                     # outputs
                         emb_buf, sems):                           # scratch
    b = pl.program_id(0)
    S, Hp = emb_buf.shape

    # Row gather straight from the HBM-resident combined embedding table.
    # The demonstration-soft merge is already folded into merged_ids in the
    # wrapper, so one unconditional DMA per position does lookup + merge.
    # TODO(synk): torch's masked_scatter packs demon embeddings into masked slots
    # in order; demonstration_soft_input_ids are assumed positionally aligned.
    for s in range(S):
        pltpu.make_async_copy(tab_hbm.at[pl.ds(merged_ids_ref[b, s], 1)],
                              emb_buf.at[pl.ds(s, 1)],
                              sems.at[s]).start()
    for s in range(S):
        pltpu.make_async_copy(tab_hbm.at[pl.ds(0, 1)],
                              emb_buf.at[pl.ds(s, 1)],
                              sems.at[s]).wait()

    # TODO(synk): base_model is an external PreTrainedModel transformer; replaced
    # by a single dense+tanh layer, with attention_mask zeroing padded positions.
    x = emb_buf[...].astype(jnp.bfloat16)                      # bf16 MXU inputs
    h = jnp.dot(x, w_enc_ref[...],
                preferred_element_type=jnp.float32) + b_enc_ref[...]
    h = jnp.tanh(h) * attn_ref[...]                            # (S,Hp) * (S,1)
    hidden_ref[...] = h

    # Emit only the rows the heads need: the [MASK] row and the [CLS] row.
    # TODO(synk): assumes exactly one mlm_label>0 position per sequence.
    mp = mask_pos_ref[b]
    row_ids = jax.lax.broadcasted_iota(jnp.int32, (S, 1), 0)
    sel = (row_ids == mp).astype(jnp.float32)
    head_ref[0:1, :] = jnp.sum(sel * h, axis=0, keepdims=True)  # [MASK] row
    head_ref[1:2, :] = h[0:1, :]                                # [CLS]  row


# ---------------------------------------------------------------------------
# Kernel 2: mlm_head + cls head (single fused MXU matmul) + both CE losses.
# ---------------------------------------------------------------------------
def _make_heads_loss_kernel(lambda_rate, H, nV, eps=1e-12):
    def kernel(stk_ref, cls_label_ref, w_t_ref, b_t_ref, gamma_ref, beta_ref,
               w_heads_ref, b_heads_ref, logits_ref, cls_ref, loss_ref):
        B = stk_ref.shape[0] // 2
        Hp = stk_ref.shape[1]
        nVp = logits_ref.shape[1]

        sh = stk_ref[...]                      # (2B, Hp): rows [0,B)=MASK, [B,2B)=CLS
        masked_h = sh[:B, :]
        cls_h = sh[B:, :]

        # mlm_head transform: dense + gelu + LayerNorm over the true hidden size H.
        # Padded columns of t are exactly 0 (w_t/b_t zero-padded, gelu(0)=0), so
        # lane-axis sums over Hp equal sums over H.
        t = jnp.dot(masked_h, w_t_ref[...],
                    preferred_element_type=jnp.float32) + b_t_ref[...]
        t = jax.nn.gelu(t, approximate=True)
        hmask = (jax.lax.broadcasted_iota(jnp.int32, (1, Hp), 1) < H).astype(jnp.float32)
        mu = jnp.sum(t, axis=-1, keepdims=True) / H
        d = (t - mu) * hmask
        var = jnp.sum(d * d, axis=-1, keepdims=True) / H
        t = (t - mu) * jax.lax.rsqrt(var + eps) * gamma_ref[...] + beta_ref[...]

        # Single fused MXU matmul for both heads: [t ; cls_h] @ [wdec | wcls].
        heads_in = jnp.concatenate([t, cls_h], axis=0)                       # (2B, Hp)
        out = jnp.dot(heads_in, w_heads_ref[...],
                      preferred_element_type=jnp.float32)                    # (2B, 2nVp)
        bh = b_heads_ref[...]                                                # (1, 2nVp)
        logits = out[:B, :nVp] + bh[:, :nVp]
        cls = out[B:, nVp:] + bh[:, nVp:]
        logits_ref[...] = logits
        cls_ref[...] = cls

        # Cross-entropy over the true nV verbalizer columns only.
        col = jax.lax.broadcasted_iota(jnp.int32, (B, nVp), 1)
        valid = col < nV
        lg = jnp.where(valid, logits, -1e30)
        cl = jnp.where(valid, cls, -1e30)

        # one-hot(cls_label) built from SMEM scalars (B is small & static).
        rows = jax.lax.broadcasted_iota(jnp.int32, (B, 1), 0)
        lab = jnp.zeros((B, 1), jnp.int32)
        for i in range(B):
            lab = lab + jnp.where(rows == i, cls_label_ref[i], 0)
        onehot = (lab == col).astype(jnp.float32)

        def ce(x):
            m = jnp.max(x, axis=-1, keepdims=True)
            lse = m + jnp.log(jnp.sum(jnp.exp(x - m), axis=-1, keepdims=True))
            picked = jnp.sum(onehot * x, axis=-1, keepdims=True)
            return jnp.sum(lse - picked) / B

        loss_ref[0, 0] = ce(lg) + lambda_rate * ce(cl)

    return kernel


# ---------------------------------------------------------------------------
# One-time glue (hoisted out of the per-step forward).
# ---------------------------------------------------------------------------
def prepare_params(params, verbalizer):
    H = params['embed'].shape[1]
    nV = int(verbalizer.shape[0])
    Hp = _round_up(H, 128)
    nVp = _round_up(nV, 128)
    V = params['embed'].shape[0]
    Vd = params['demon_embed'].shape[0]

    def pad2(a, r, c):
        a = jnp.asarray(a, jnp.float32)
        return jnp.zeros((r, c), jnp.float32).at[:a.shape[0], :a.shape[1]].set(a)

    combined_tab = jnp.concatenate(
        [pad2(params['embed'], V, Hp), pad2(params['demon_embed'], Vd, Hp)], axis=0)

    wdec_verb_t = params['w_dec'][verbalizer].T                 # (H, nV)
    bdec_verb = params['b_dec'][verbalizer].reshape(1, nV)
    wcls_t = params['w_cls'].T                                  # (H, nV)

    prep = {
        'combined_tab': combined_tab,                           # (V+Vd, Hp) f32, HBM resident
        'w_enc': pad2(params['w_enc'], Hp, Hp).astype(jnp.bfloat16),
        'b_enc': pad2(params['b_enc'], 1, Hp),
        'w_t': pad2(params['w_t'], Hp, Hp),
        'b_t': pad2(params['b_t'], 1, Hp),
        'gamma': pad2(params['gamma'], 1, Hp),
        'beta': pad2(params['beta'], 1, Hp),
        'w_heads': jnp.concatenate([pad2(wdec_verb_t, Hp, nVp),
                                    pad2(wcls_t, Hp, nVp)], axis=1),   # (Hp, 2*nVp)
        'b_heads': jnp.concatenate([pad2(bdec_verb, 1, nVp),
                                    pad2(params['b_cls'], 1, nVp)], axis=1),
    }
    meta = dict(H=H, Hp=Hp, nV=nV, nVp=nVp, V=V)
    return prep, meta


# ---------------------------------------------------------------------------
# Forward.
# ---------------------------------------------------------------------------
def conti_demon_forward(prep, meta, input_ids, attention_mask,
                        demonstration_soft_input_ids, demonstration_soft_label,
                        mlm_label, cls_label, lambda_rate):
    B, S = input_ids.shape
    H, Hp, nV, nVp, V = meta['H'], meta['Hp'], meta['nV'], meta['nVp'], meta['V']

    # Cheap wrapper glue: fold the masked_scatter merge into the gather indices,
    # and precompute the single [MASK] position per sequence.
    merged_ids = jnp.where(demonstration_soft_label > 0,
                           V + demonstration_soft_input_ids,
                           input_ids).astype(jnp.int32)
    mask_pos = jnp.argmax(mlm_label > 0, axis=1).astype(jnp.int32)
    attn_f32 = attention_mask.astype(jnp.float32).reshape(B, S, 1)

    grid_spec = pltpu.PrefetchScalarGridSpec(
        num_scalar_prefetch=2,
        grid=(B,),
        in_specs=[
            pl.BlockSpec(memory_space=pl.ANY),                            # combined table (HBM)
            pl.BlockSpec((None, S, 1), lambda b, mi, mp: (b, 0, 0)),      # attention mask
            pl.BlockSpec((Hp, Hp), lambda b, mi, mp: (0, 0)),             # w_enc (bf16)
            pl.BlockSpec((1, Hp), lambda b, mi, mp: (0, 0)),              # b_enc
        ],
        out_specs=[
            pl.BlockSpec((None, S, Hp), lambda b, mi, mp: (b, 0, 0)),     # hidden states
            pl.BlockSpec((None, 2, Hp), lambda b, mi, mp: (b, 0, 0)),     # [MASK],[CLS] rows
        ],
        scratch_shapes=[pltpu.VMEM((S, Hp), jnp.float32),
                        pltpu.SemaphoreType.DMA((S,))],
    )
    hidden_states, head_rows = pl.pallas_call(
        _embed_encode_kernel,
        out_shape=(jax.ShapeDtypeStruct((B, S, Hp), jnp.float32),
                   jax.ShapeDtypeStruct((B, 2, Hp), jnp.float32)),
        grid_spec=grid_spec,
        compiler_params=pltpu.CompilerParams(dimension_semantics=("parallel",)),
    )(merged_ids, mask_pos, prep['combined_tab'], attn_f32,
      prep['w_enc'], prep['b_enc'])

    # Layout plumbing in the wrapper: (B,2,Hp) -> (2B,Hp), all MASK rows first.
    head_2d = head_rows.transpose(1, 0, 2).reshape(2 * B, Hp)

    VMEM = pl.BlockSpec(memory_space=pltpu.MemorySpace.VMEM)
    SMEM = pl.BlockSpec(memory_space=pltpu.MemorySpace.SMEM)
    logits_p, cls_p, loss = pl.pallas_call(
        _make_heads_loss_kernel(float(lambda_rate), H, nV),
        out_shape=(jax.ShapeDtypeStruct((B, nVp), jnp.float32),
                   jax.ShapeDtypeStruct((B, nVp), jnp.float32),
                   jax.ShapeDtypeStruct((1, 1), jnp.float32)),
        in_specs=[VMEM, SMEM, VMEM, VMEM, VMEM, VMEM, VMEM, VMEM],
        out_specs=(VMEM, VMEM, SMEM),
    )(head_2d, cls_label.astype(jnp.int32), prep['w_t'], prep['b_t'],
      prep['gamma'], prep['beta'], prep['w_heads'], prep['b_heads'])

    return {'loss': loss[0, 0],
            'logits': logits_p[:, :nV],
            'cls': cls_p[:, :nV],
            'hidden_states': hidden_states[:, :, :H]}


# ---------------------------------------------------------------------------
# Pure-JAX reference (mirrors the stand-in math) for a sanity check.
# ---------------------------------------------------------------------------
def _reference_forward(params, prep, input_ids, attention_mask, demon_ids,
                       demon_label, mlm_label, cls_label, verbalizer, lambda_rate):
    H = params['embed'].shape[1]
    base = params['embed'][input_ids]
    dem = params['demon_embed'][demon_ids]
    emb = jnp.where((demon_label > 0)[..., None], dem, base)
    x = emb.astype(jnp.bfloat16)
    w_enc = prep['w_enc'][:H, :H]                       # bf16, same values as kernel
    h = jnp.tanh(jnp.einsum('bsh,hk->bsk', x, w_enc,
                            preferred_element_type=jnp.float32) + params['b_enc'])
    h = h * attention_mask[..., None].astype(jnp.float32)
    mask_pos = jnp.argmax(mlm_label > 0, axis=1)
    masked_h = h[jnp.arange(h.shape[0]), mask_pos]
    t = masked_h @ params['w_t'] + params['b_t']
    t = jax.nn.gelu(t, approximate=True)
    mu = jnp.mean(t, axis=-1, keepdims=True)
    var = jnp.mean((t - mu) ** 2, axis=-1, keepdims=True)
    t = (t - mu) * jax.lax.rsqrt(var + 1e-12) * params['gamma'] + params['beta']
    logits = t @ params['w_dec'][verbalizer].T + params['b_dec'][verbalizer]
    cls = h[:, 0, :] @ params['w_cls'].T + params['b_cls']

    def ce(x, y):
        lse = jax.nn.logsumexp(x, axis=-1)
        picked = jnp.take_along_axis(x, y[:, None], axis=-1)[:, 0]
        return jnp.mean(lse - picked)

    loss = ce(logits, cls_label) + lambda_rate * ce(cls, cls_label)
    return loss, logits, cls, h


if __name__ == "__main__":
    B, S, H = 2, 8, 32
    vocab = 64
    total_soft_len = 7          # demon embedding table has 1 + total_soft_len rows
    n_verb = 4
    lambda_rate = 0.5

    key = jax.random.PRNGKey(0)
    ks = jax.random.split(key, 10)

    params = {
        'embed': 0.02 * jax.random.normal(ks[0], (vocab, H), jnp.float32),
        'demon_embed': (0.02 * jax.random.normal(ks[1], (1 + total_soft_len, H),
                                                 jnp.float32)).at[0].set(0.0),  # padding_idx=0
        'w_enc': 0.1 * jax.random.normal(ks[2], (H, H), jnp.float32),
        'b_enc': jnp.zeros((1, H), jnp.float32),
        'w_t': 0.1 * jax.random.normal(ks[3], (H, H), jnp.float32),
        'b_t': jnp.zeros((1, H), jnp.float32),
        'gamma': jnp.ones((1, H), jnp.float32),
        'beta': jnp.zeros((1, H), jnp.float32),
        'w_dec': 0.05 * jax.random.normal(ks[4], (vocab, H), jnp.float32),
        'b_dec': jnp.zeros((vocab,), jnp.float32),
        'b_cls': 0.01 * jax.random.normal(ks[5], (1, n_verb), jnp.float32),
    }
    verbalizer = jnp.array([5, 11, 23, 42], dtype=jnp.int32)
    # cls_layer.weight.data = mlm_decoder.weight[verbalizer_idx, :]
    params['w_cls'] = params['w_dec'][verbalizer]              # (nV, H)

    input_ids = jax.random.randint(ks[6], (B, S), 1, vocab, dtype=jnp.int32)
    attention_mask = jnp.ones((B, S), jnp.int32).at[1, S - 1].set(0)  # one padded position

    # soft-demonstration tokens at positions 2..4, ids 1..3 (0 = padding elsewhere)
    pos = jnp.arange(S)
    soft_pos = (pos >= 2) & (pos <= 4)
    demonstration_soft_label = jnp.tile(jnp.where(soft_pos, 1, 0)[None, :].astype(jnp.int32),
                                        (B, 1))
    demonstration_soft_input_ids = jnp.tile(jnp.where(soft_pos, pos - 1, 0)[None, :]
                                            .astype(jnp.int32), (B, 1))

    mlm_label = jnp.zeros((B, S), jnp.int32).at[:, 6].set(1)   # one [MASK] per sequence
    cls_label = jax.random.randint(ks[7], (B,), 0, n_verb, dtype=jnp.int32)

    prep, meta = prepare_params(params, verbalizer)
    out = conti_demon_forward(prep, meta, input_ids, attention_mask,
                              demonstration_soft_input_ids, demonstration_soft_label,
                              mlm_label, cls_label, lambda_rate)
    jax.block_until_ready(out)

    ref_loss, ref_logits, ref_cls, ref_hidden = _reference_forward(
        params, prep, input_ids, attention_mask, demonstration_soft_input_ids,
        demonstration_soft_label, mlm_label, cls_label, verbalizer, lambda_rate)

    assert out['logits'].shape == (B, n_verb)
    assert out['cls'].shape == (B, n_verb)
    assert out['hidden_states'].shape == (B, S, H)
    assert bool(jnp.isfinite(out['loss']))
    assert bool(jnp.allclose(out['hidden_states'], ref_hidden, rtol=2e-2, atol=2e-2))
    assert bool(jnp.allclose(out['logits'], ref_logits, rtol=2e-2, atol=2e-2))
    assert bool(jnp.allclose(out['cls'], ref_cls, rtol=2e-2, atol=2e-2))
    assert bool(jnp.allclose(out['loss'], ref_loss, rtol=2e-2, atol=2e-2))
    print("KERNEL_OK")
</pallas_src>

<mosaic_0001>
module attributes {stable_mosaic.version = 11 : i64} {
  func.func @_embed_encode_kernel(%arg0: i32, %arg1: memref<2x8xi32, #tpu.memory_space<smem>>, %arg2: memref<2xi32, #tpu.memory_space<smem>>, %arg3: memref<72x128xf32, #tpu.memory_space<any>>, %arg4: memref<1x8x1xf32, #tpu.memory_space<vmem>>, %arg5: memref<128x128xbf16, #tpu.memory_space<vmem>>, %arg6: memref<1x128xf32, #tpu.memory_space<vmem>>, %arg7: memref<1x8x128xf32, #tpu.memory_space<vmem>>, %arg8: memref<1x2x128xf32, #tpu.memory_space<vmem>>, %arg9: memref<8x128xf32, #tpu.memory_space<vmem>>, %arg10: memref<8x!tpu.dma_semaphore, #tpu.memory_space<semaphore_mem>>) attributes {dimension_semantics = [#tpu.dimension_semantics<parallel>], iteration_bounds = array<i64: 2>, scalar_prefetch = 2 : i64, scratch_operands = 2 : i64, tpu.core_type = #tpu.core_type<tc>, window_params = [{}, {transform_indices = @transform_1, window_bounds = array<i64: 1, 8, 1>}, {pipeline_mode = #tpu.pipeline_mode<synchronous>, transform_indices = @transform_2, window_bounds = array<i64: 128, 128>}, {pipeline_mode = #tpu.pipeline_mode<synchronous>, transform_indices = @transform_3, window_bounds = array<i64: 1, 128>}, {transform_indices = @transform_4, window_bounds = array<i64: 1, 8, 128>}, {transform_indices = @transform_5, window_bounds = array<i64: 1, 2, 128>}]} {
    %0 = arith.index_cast %arg0 : i32 to index
    %c0 = arith.constant 0 : index
    %1 = memref.load %arg1[%0, %c0] : memref<2x8xi32, #tpu.memory_space<smem>>
    %c0_i32 = arith.constant 0 : i32
    %c0_i32_0 = arith.constant 0 : i32
    %2 = tpu.memref_slice %arg3[%1, %c0_i32_0] : memref<72x128xf32, #tpu.memory_space<any>> -> memref<1x128xf32, #tpu.memory_space<any>>
    %c0_i32_1 = arith.constant 0 : i32
    %c0_i32_2 = arith.constant 0 : i32
    %3 = tpu.memref_slice %arg9[%c0_i32_1, %c0_i32_2] : memref<8x128xf32, #tpu.memory_space<vmem>> -> memref<1x128xf32, #tpu.memory_space<vmem>>
    %4 = tpu.memref_slice %arg10[%c0_i32] : memref<8x!tpu.dma_semaphore, #tpu.memory_space<semaphore_mem>> -> memref<1x!tpu.dma_semaphore, #tpu.memory_space<semaphore_mem>>
    %5 = tpu.memref_squeeze %4 : memref<1x!tpu.dma_semaphore, #tpu.memory_space<semaphore_mem>> -> memref<!tpu.dma_semaphore, #tpu.memory_space<semaphore_mem>>
    tpu.enqueue_dma source(%2 : memref<1x128xf32, #tpu.memory_space<any>>) target(%3 : memref<1x128xf32, #tpu.memory_space<vmem>>) target_semaphore(%5 : memref<!tpu.dma_semaphore, #tpu.memory_space<semaphore_mem>>)
    %6 = arith.index_cast %arg0 : i32 to index
    %c1 = arith.constant 1 : index
    %7 = memref.load %arg1[%6, %c1] : memref<2x8xi32, #tpu.memory_space<smem>>
    %c1_i32 = arith.constant 1 : i32
    %c0_i32_3 = arith.constant 0 : i32
    %8 = tpu.memref_slice %arg3[%7, %c0_i32_3] : memref<72x128xf32, #tpu.memory_space<any>> -> memref<1x128xf32, #tpu.memory_space<any>>
    %c1_i32_4 = arith.constant 1 : i32
    %c0_i32_5 = arith.constant 0 : i32
    %9 = tpu.memref_slice %arg9[%c1_i32_4, %c0_i32_5] : memref<8x128xf32, #tpu.memory_space<vmem>> -> memref<1x128xf32, #tpu.memory_space<vmem>>
    %10 = tpu.memref_slice %arg10[%c1_i32] : memref<8x!tpu.dma_semaphore, #tpu.memory_space<semaphore_mem>> -> memref<1x!tpu.dma_semaphore, #tpu.memory_space<semaphore_mem>>
    %11 = tpu.memref_squeeze %10 : memref<1x!tpu.dma_semaphore, #tpu.memory_space<semaphore_mem>> -> memref<!tpu.dma_semaphore, #tpu.memory_space<semaphore_mem>>
    tpu.enqueue_dma source(%8 : memref<1x128xf32, #tpu.memory_space<any>>) target(%9 : memref<1x128xf32, #tpu.memory_space<vmem>>) target_semaphore(%11 : memref<!tpu.dma_semaphore, #tpu.memory_space<semaphore_mem>>)
    %12 = arith.index_cast %arg0 : i32 to index
    %c2 = arith.constant 2 : index
    %13 = memref.load %arg1[%12, %c2] : memref<2x8xi32, #tpu.memory_space<smem>>
    %c2_i32 = arith.constant 2 : i32
    %c0_i32_6 = arith.constant 0 : i32
    %14 = tpu.memref_slice %arg3[%13, %c0_i32_6] : memref<72x128xf32, #tpu.memory_space<any>> -> memref<1x128xf32, #tpu.memory_space<any>>
    %c2_i32_7 = arith.constant 2 : i32
    %c0_i32_8 = arith.constant 0 : i32
    %15 = tpu.memref_slice %arg9[%c2_i32_7, %c0_i32_8] : memref<8x128xf32, #tpu.memory_space<vmem>> -> memref<1x128xf32, #tpu.memory_space<vmem>>
    %16 = tpu.memref_slice %arg10[%c2_i32] : memref<8x!tpu.dma_semaphore, #tpu.memory_space<semaphore_mem>> -> memref<1x!tpu.dma_semaphore, #tpu.memory_space<semaphore_mem>>
    %17 = tpu.memref_squeeze %16 : memref<1x!tpu.dma_semaphore, #tpu.memory_space<semaphore_mem>> -> memref<!tpu.dma_semaphore, #tpu.memory_space<semaphore_mem>>
    tpu.enqueue_dma source(%14 : memref<1x128xf32, #tpu.memory_space<any>>) target(%15 : memref<1x128xf32, #tpu.memory_space<vmem>>) target_semaphore(%17 : memref<!tpu.dma_semaphore, #tpu.memory_space<semaphore_mem>>)
    %18 = arith.index_cast %arg0 : i32 to index
    %c3 = arith.constant 3 : index
    %19 = memref.load %arg1[%18, %c3] : memref<2x8xi32, #tpu.memory_space<smem>>
    %c3_i32 = arith.constant 3 : i32
    %c0_i32_9 = arith.constant 0 : i32
    %20 = tpu.memref_slice %arg3[%19, %c0_i32_9] : memref<72x128xf32, #tpu.memory_space<any>> -> memref<1x128xf32, #tpu.memory_space<any>>
    %c3_i32_10 = arith.constant 3 : i32
    %c0_i32_11 = arith.constant 0 : i32
    %21 = tpu.memref_slice %arg9[%c3_i32_10, %c0_i32_11] : memref<8x128xf32, #tpu.memory_space<vmem>> -> memref<1x128xf32, #tpu.memory_space<vmem>>
    %22 = tpu.memref_slice %arg10[%c3_i32] : memref<8x!tpu.dma_semaphore, #tpu.memory_space<semaphore_mem>> -> memref<1x!tpu.dma_semaphore, #tpu.memory_space<semaphore_mem>>
    %23 = tpu.memref_squeeze %22 : memref<1x!tpu.dma_semaphore, #tpu.memory_space<semaphore_mem>> -> memref<!tpu.dma_semaphore, #tpu.memory_space<semaphore_mem>>
    tpu.enqueue_dma source(%20 : memref<1x128xf32, #tpu.memory_space<any>>) target(%21 : memref<1x128xf32, #tpu.memory_space<vmem>>) target_semaphore(%23 : memref<!tpu.dma_semaphore, #tpu.memory_space<semaphore_mem>>)
    %24 = arith.index_cast %arg0 : i32 to index
    %c4 = arith.constant 4 : index
    %25 = memref.load %arg1[%24, %c4] : memref<2x8xi32, #tpu.memory_space<smem>>
    %c4_i32 = arith.constant 4 : i32
    %c0_i32_12 = arith.constant 0 : i32
    %26 = tpu.memref_slice %arg3[%25, %c0_i32_12] : memref<72x128xf32, #tpu.memory_space<any>> -> memref<1x128xf32, #tpu.memory_space<any>>
    %c4_i32_13 = arith.constant 4 : i32
    %c0_i32_14 = arith.constant 0 : i32
    %27 = tpu.memref_slice %arg9[%c4_i32_13, %c0_i32_14] : memref<8x128xf32, #tpu.memory_space<vmem>> -> memref<1x128xf32, #tpu.memory_space<vmem>>
    %28 = tpu.memref_slice %arg10[%c4_i32] : memref<8x!tpu.dma_semaphore, #tpu.memory_space<semaphore_mem>> -> memref<1x!tpu.dma_semaphore, #tpu.memory_space<semaphore_mem>>
    %29 = tpu.memref_squeeze %28 : memref<1x!tpu.dma_semaphore, #tpu.memory_space<semaphore_mem>> -> memref<!tpu.dma_semaphore, #tpu.memory_space<semaphore_mem>>
    tpu.enqueue_dma source(%26 : memref<1x128xf32, #tpu.memory_space<any>>) target(%27 : memref<1x128xf32, #tpu.memory_space<vmem>>) target_semaphore(%29 : memref<!tpu.dma_semaphore, #tpu.memory_space<semaphore_mem>>)
    %30 = arith.index_cast %arg0 : i32 to index
    %c5 = arith.constant 5 : index
    %31 = memref.load %arg1[%30, %c5] : memref<2x8xi32, #tpu.memory_space<smem>>
    %c5_i32 = arith.constant 5 : i32
    %c0_i32_15 = arith.constant 0 : i32
    %32 = tpu.memref_slice %arg3[%31, %c0_i32_15] : memref<72x128xf32, #tpu.memory_space<any>> -> memref<1x128xf32, #tpu.memory_space<any>>
    %c5_i32_16 = arith.constant 5 : i32
    %c0_i32_17 = arith.constant 0 : i32
    %33 = tpu.memref_slice %arg9[%c5_i32_16, %c0_i32_17] : memref<8x128xf32, #tpu.memory_space<vmem>> -> memref<1x128xf32, #tpu.memory_space<vmem>>
    %34 = tpu.memref_slice %arg10[%c5_i32] : memref<8x!tpu.dma_semaphore, #tpu.memory_space<semaphore_mem>> -> memref<1x!tpu.dma_semaphore, #tpu.memory_space<semaphore_mem>>
    %35 = tpu.memref_squeeze %34 : memref<1x!tpu.dma_semaphore, #tpu.memory_space<semaphore_mem>> -> memref<!tpu.dma_semaphore, #tpu.memory_space<semaphore_mem>>
    tpu.enqueue_dma source(%32 : memref<1x128xf32, #tpu.memory_space<any>>) target(%33 : memref<1x128xf32, #tpu.memory_space<vmem>>) target_semaphore(%35 : memref<!tpu.dma_semaphore, #tpu.memory_space<semaphore_mem>>)
    %36 = arith.index_cast %arg0 : i32 to index
    %c6 = arith.constant 6 : index
    %37 = memref.load %arg1[%36, %c6] : memref<2x8xi32, #tpu.memory_space<smem>>
    %c6_i32 = arith.constant 6 : i32
    %c0_i32_18 = arith.constant 0 : i32
    %38 = tpu.memref_slice %arg3[%37, %c0_i32_18] : memref<72x128xf32, #tpu.memory_space<any>> -> memref<1x128xf32, #tpu.memory_space<any>>
    %c6_i32_19 = arith.constant 6 : i32
    %c0_i32_20 = arith.constant 0 : i32
    %39 = tpu.memref_slice %arg9[%c6_i32_19, %c0_i32_20] : memref<8x128xf32, #tpu.memory_space<vmem>> -> memref<1x128xf32, #tpu.memory_space<vmem>>
    %40 = tpu.memref_slice %arg10[%c6_i32] : memref<8x!tpu.dma_semaphore, #tpu.memory_space<semaphore_mem>> -> memref<1x!tpu.dma_semaphore, #tpu.memory_space<semaphore_mem>>
    %41 = tpu.memref_squeeze %40 : memref<1x!tpu.dma_semaphore, #tpu.memory_space<semaphore_mem>> -> memref<!tpu.dma_semaphore, #tpu.memory_space<semaphore_mem>>
    tpu.enqueue_dma source(%38 : memref<1x128xf32, #tpu.memory_space<any>>) target(%39 : memref<1x128xf32, #tpu.memory_space<vmem>>) target_semaphore(%41 : memref<!tpu.dma_semaphore, #tpu.memory_space<semaphore_mem>>)
    %42 = arith.index_cast %arg0 : i32 to index
    %c7 = arith.constant 7 : index
    %43 = memref.load %arg1[%42, %c7] : memref<2x8xi32, #tpu.memory_space<smem>>
    %c7_i32 = arith.constant 7 : i32
    %c0_i32_21 = arith.constant 0 : i32
    %44 = tpu.memref_slice %arg3[%43, %c0_i32_21] : memref<72x128xf32, #tpu.memory_space<any>> -> memref<1x128xf32, #tpu.memory_space<any>>
    %c7_i32_22 = arith.constant 7 : i32
    %c0_i32_23 = arith.constant 0 : i32
    %45 = tpu.memref_slice %arg9[%c7_i32_22, %c0_i32_23] : memref<8x128xf32, #tpu.memory_space<vmem>> -> memref<1x128xf32, #tpu.memory_space<vmem>>
    %46 = tpu.memref_slice %arg10[%c7_i32] : memref<8x!tpu.dma_semaphore, #tpu.memory_space<semaphore_mem>> -> memref<1x!tpu.dma_semaphore, #tpu.memory_space<semaphore_mem>>
    %47 = tpu.memref_squeeze %46 : memref<1x!tpu.dma_semaphore, #tpu.memory_space<semaphore_mem>> -> memref<!tpu.dma_semaphore, #tpu.memory_space<semaphore_mem>>
    tpu.enqueue_dma source(%44 : memref<1x128xf32, #tpu.memory_space<any>>) target(%45 : memref<1x128xf32, #tpu.memory_space<vmem>>) target_semaphore(%47 : memref<!tpu.dma_semaphore, #tpu.memory_space<semaphore_mem>>)
    %c0_i32_24 = arith.constant 0 : i32
    %c0_i32_25 = arith.constant 0 : i32
    %c0_i32_26 = arith.constant 0 : i32
    %48 = tpu.memref_slice %arg3[%c0_i32_25, %c0_i32_26] : memref<72x128xf32, #tpu.memory_space<any>> -> memref<1x128xf32, #tpu.memory_space<any>>
    %c0_i32_27 = arith.constant 0 : i32
    %c0_i32_28 = arith.constant 0 : i32
    %49 = tpu.memref_slice %arg9[%c0_i32_27, %c0_i32_28] : memref<8x128xf32, #tpu.memory_space<vmem>> -> memref<1x128xf32, #tpu.memory_space<vmem>>
    %50 = tpu.memref_slice %arg10[%c0_i32_24] : memref<8x!tpu.dma_semaphore, #tpu.memory_space<semaphore_mem>> -> memref<1x!tpu.dma_semaphore, #tpu.memory_space<semaphore_mem>>
    %51 = tpu.memref_squeeze %50 : memref<1x!tpu.dma_semaphore, #tpu.memory_space<semaphore_mem>> -> memref<!tpu.dma_semaphore, #tpu.memory_space<semaphore_mem>>
    tpu.wait_dma2 semaphore(%51 : memref<!tpu.dma_semaphore, #tpu.memory_space<semaphore_mem>>) src(%48 : memref<1x128xf32, #tpu.memory_space<any>>) dst(%49 : memref<1x128xf32, #tpu.memory_space<vmem>>)
    %c1_i32_29 = arith.constant 1 : i32
    %c0_i32_30 = arith.constant 0 : i32
    %c0_i32_31 = arith.constant 0 : i32
    %52 = tpu.memref_slice %arg3[%c0_i32_30, %c0_i32_31] : memref<72x128xf32, #tpu.memory_space<any>> -> memref<1x128xf32, #tpu.memory_space<any>>
    %c1_i32_32 = arith.constant 1 : i32
    %c0_i32_33 = arith.constant 0 : i32
    %53 = tpu.memref_slice %arg9[%c1_i32_32, %c0_i32_33] : memref<8x128xf32, #tpu.memory_space<vmem>> -> memref<1x128xf32, #tpu.memory_space<vmem>>
    %54 = tpu.memref_slice %arg10[%c1_i32_29] : memref<8x!tpu.dma_semaphore, #tpu.memory_space<semaphore_mem>> -> memref<1x!tpu.dma_semaphore, #tpu.memory_space<semaphore_mem>>
    %55 = tpu.memref_squeeze %54 : memref<1x!tpu.dma_semaphore, #tpu.memory_space<semaphore_mem>> -> memref<!tpu.dma_semaphore, #tpu.memory_space<semaphore_mem>>
    tpu.wait_dma2 semaphore(%55 : memref<!tpu.dma_semaphore, #tpu.memory_space<semaphore_mem>>) src(%52 : memref<1x128xf32, #tpu.memory_space<any>>) dst(%53 : memref<1x128xf32, #tpu.memory_space<vmem>>)
    %c2_i32_34 = arith.constant 2 : i32
    %c0_i32_35 = arith.constant 0 : i32
    %c0_i32_36 = arith.constant 0 : i32
    %56 = tpu.memref_slice %arg3[%c0_i32_35, %c0_i32_36] : memref<72x128xf32, #tpu.memory_space<any>> -> memref<1x128xf32, #tpu.memory_space<any>>
    %c2_i32_37 = arith.constant 2 : i32
    %c0_i32_38 = arith.constant 0 : i32
    %57 = tpu.memref_slice %arg9[%c2_i32_37, %c0_i32_38] : memref<8x128xf32, #tpu.memory_space<vmem>> -> memref<1x128xf32, #tpu.memory_space<vmem>>
    %58 = tpu.memref_slice %arg10[%c2_i32_34] : memref<8x!tpu.dma_semaphore, #tpu.memory_space<semaphore_mem>> -> memref<1x!tpu.dma_semaphore, #tpu.memory_space<semaphore_mem>>
    %59 = tpu.memref_squeeze %58 : memref<1x!tpu.dma_semaphore, #tpu.memory_space<semaphore_mem>> -> memref<!tpu.dma_semaphore, #tpu.memory_space<semaphore_mem>>
    tpu.wait_dma2 semaphore(%59 : memref<!tpu.dma_semaphore, #tpu.memory_space<semaphore_mem>>) src(%56 : memref<1x128xf32, #tpu.memory_space<any>>) dst(%57 : memref<1x128xf32, #tpu.memory_space<vmem>>)
    %c3_i32_39 = arith.constant 3 : i32
    %c0_i32_40 = arith.constant 0 : i32
    %c0_i32_41 = arith.constant 0 : i32
    %60 = tpu.memref_slice %arg3[%c0_i32_40, %c0_i32_41] : memref<72x128xf32, #tpu.memory_space<any>> -> memref<1x128xf32, #tpu.memory_space<any>>
    %c3_i32_42 = arith.constant 3 : i32
    %c0_i32_43 = arith.constant 0 : i32
    %61 = tpu.memref_slice %arg9[%c3_i32_42, %c0_i32_43] : memref<8x128xf32, #tpu.memory_space<vmem>> -> memref<1x128xf32, #tpu.memory_space<vmem>>
    %62 = tpu.memref_slice %arg10[%c3_i32_39] : memref<8x!tpu.dma_semaphore, #tpu.memory_space<semaphore_mem>> -> memref<1x!tpu.dma_semaphore, #tpu.memory_space<semaphore_mem>>
    %63 = tpu.memref_squeeze %62 : memref<1x!tpu.dma_semaphore, #tpu.memory_space<semaphore_mem>> -> memref<!tpu.dma_semaphore, #tpu.memory_space<semaphore_mem>>
    tpu.wait_dma2 semaphore(%63 : memref<!tpu.dma_semaphore, #tpu.memory_space<semaphore_mem>>) src(%60 : memref<1x128xf32, #tpu.memory_space<any>>) dst(%61 : memref<1x128xf32, #tpu.memory_space<vmem>>)
    %c4_i32_44 = arith.constant 4 : i32
    %c0_i32_45 = arith.constant 0 : i32
    %c0_i32_46 = arith.constant 0 : i32
    %64 = tpu.memref_slice %arg3[%c0_i32_45, %c0_i32_46] : memref<72x128xf32, #tpu.memory_space<any>> -> memref<1x128xf32, #tpu.memory_space<any>>
    %c4_i32_47 = arith.constant 4 : i32
    %c0_i32_48 = arith.constant 0 : i32
    %65 = tpu.memref_slice %arg9[%c4_i32_47, %c0_i32_48] : memref<8x128xf32, #tpu.memory_space<vmem>> -> memref<1x128xf32, #tpu.memory_space<vmem>>
    %66 = tpu.memref_slice %arg10[%c4_i32_44] : memref<8x!tpu.dma_semaphore, #tpu.memory_space<semaphore_mem>> -> memref<1x!tpu.dma_semaphore, #tpu.memory_space<semaphore_mem>>
    %67 = tpu.memref_squeeze %66 : memref<1x!tpu.dma_semaphore, #tpu.memory_space<semaphore_mem>> -> memref<!tpu.dma_semaphore, #tpu.memory_space<semaphore_mem>>
    tpu.wait_dma2 semaphore(%67 : memref<!tpu.dma_semaphore, #tpu.memory_space<semaphore_mem>>) src(%64 : memref<1x128xf32, #tpu.memory_space<any>>) dst(%65 : memref<1x128xf32, #tpu.memory_space<vmem>>)
    %c5_i32_49 = arith.constant 5 : i32
    %c0_i32_50 = arith.constant 0 : i32
    %c0_i32_51 = arith.constant 0 : i32
    %68 = tpu.memref_slice %arg3[%c0_i32_50, %c0_i32_51] : memref<72x128xf32, #tpu.memory_space<any>> -> memref<1x128xf32, #tpu.memory_space<any>>
    %c5_i32_52 = arith.constant 5 : i32
    %c0_i32_53 = arith.constant 0 : i32
    %69 = tpu.memref_slice %arg9[%c5_i32_52, %c0_i32_53] : memref<8x128xf32, #tpu.memory_space<vmem>> -> memref<1x128xf32, #tpu.memory_space<vmem>>
    %70 = tpu.memref_slice %arg10[%c5_i32_49] : memref<8x!tpu.dma_semaphore, #tpu.memory_space<semaphore_mem>> -> memref<1x!tpu.dma_semaphore, #tpu.memory_space<semaphore_mem>>
    %71 = tpu.memref_squeeze %70 : memref<1x!tpu.dma_semaphore, #tpu.memory_space<semaphore_mem>> -> memref<!tpu.dma_semaphore, #tpu.memory_space<semaphore_mem>>
    tpu.wait_dma2 semaphore(%71 : memref<!tpu.dma_semaphore, #tpu.memory_space<semaphore_mem>>) src(%68 : memref<1x128xf32, #tpu.memory_space<any>>) dst(%69 : memref<1x128xf32, #tpu.memory_space<vmem>>)
    %c6_i32_54 = arith.constant 6 : i32
    %c0_i32_55 = arith.constant 0 : i32
    %c0_i32_56 = arith.constant 0 : i32
    %72 = tpu.memref_slice %arg3[%c0_i32_55, %c0_i32_56] : memref<72x128xf32, #tpu.memory_space<any>> -> memref<1x128xf32, #tpu.memory_space<any>>
    %c6_i32_57 = arith.constant 6 : i32
    %c0_i32_58 = arith.constant 0 : i32
    %73 = tpu.memref_slice %arg9[%c6_i32_57, %c0_i32_58] : memref<8x128xf32, #tpu.memory_space<vmem>> -> memref<1x128xf32, #tpu.memory_space<vmem>>
    %74 = tpu.memref_slice %arg10[%c6_i32_54] : memref<8x!tpu.dma_semaphore, #tpu.memory_space<semaphore_mem>> -> memref<1x!tpu.dma_semaphore, #tpu.memory_space<semaphore_mem>>
    %75 = tpu.memref_squeeze %74 : memref<1x!tpu.dma_semaphore, #tpu.memory_space<semaphore_mem>> -> memref<!tpu.dma_semaphore, #tpu.memory_space<semaphore_mem>>
    tpu.wait_dma2 semaphore(%75 : memref<!tpu.dma_semaphore, #tpu.memory_space<semaphore_mem>>) src(%72 : memref<1x128xf32, #tpu.memory_space<any>>) dst(%73 : memref<1x128xf32, #tpu.memory_space<vmem>>)
    %c7_i32_59 = arith.constant 7 : i32
    %c0_i32_60 = arith.constant 0 : i32
    %c0_i32_61 = arith.constant 0 : i32
    %76 = tpu.memref_slice %arg3[%c0_i32_60, %c0_i32_61] : memref<72x128xf32, #tpu.memory_space<any>> -> memref<1x128xf32, #tpu.memory_space<any>>
    %c7_i32_62 = arith.constant 7 : i32
    %c0_i32_63 = arith.constant 0 : i32
    %77 = tpu.memref_slice %arg9[%c7_i32_62, %c0_i32_63] : memref<8x128xf32, #tpu.memory_space<vmem>> -> memref<1x128xf32, #tpu.memory_space<vmem>>
    %78 = tpu.memref_slice %arg10[%c7_i32_59] : memref<8x!tpu.dma_semaphore, #tpu.memory_space<semaphore_mem>> -> memref<1x!tpu.dma_semaphore, #tpu.memory_space<semaphore_mem>>
    %79 = tpu.memref_squeeze %78 : memref<1x!tpu.dma_semaphore, #tpu.memory_space<semaphore_mem>> -> memref<!tpu.dma_semaphore, #tpu.memory_space<semaphore_mem>>
    tpu.wait_dma2 semaphore(%79 : memref<!tpu.dma_semaphore, #tpu.memory_space<semaphore_mem>>) src(%76 : memref<1x128xf32, #tpu.memory_space<any>>) dst(%77 : memref<1x128xf32, #tpu.memory_space<vmem>>)
    %c0_64 = arith.constant 0 : index
    %c0_65 = arith.constant 0 : index
    %80 = vector.load %arg9[%c0_64, %c0_65] : memref<8x128xf32, #tpu.memory_space<vmem>>, vector<8x128xf32>
    %81 = arith.truncf %80 : vector<8x128xf32> to vector<8x128xbf16>
    %c0_66 = arith.constant 0 : index
    %c0_67 = arith.constant 0 : index
    %82 = vector.load %arg5[%c0_66, %c0_67] : memref<128x128xbf16, #tpu.memory_space<vmem>>, vector<128x128xbf16>
    %cst = arith.constant dense<0.000000e+00> : vector<8x128xf32>
    %83 = tpu.matmul %81, %82, %cst {dimension_numbers = #tpu.dot_dimension_numbers<[1], [0], [0], [1], [0, 0, 1, 1], [], []>} : vector<8x128xbf16>, vector<128x128xbf16>, vector<8x128xf32> -> vector<8x128xf32>
    %c0_68 = arith.constant 0 : index
    %c0_69 = arith.constant 0 : index
    %84 = vector.load %arg6[%c0_68, %c0_69] : memref<1x128xf32, #tpu.memory_space<vmem>>, vector<1x128xf32>
    %85 = vector.broadcast %84 : vector<1x128xf32> to vector<8x128xf32>
    %86 = arith.addf %83, %85 : vector<8x128xf32>
    %87 = math.tanh %86 : vector<8x128xf32>
    %c0_70 = arith.constant 0 : index
    %c0_71 = arith.constant 0 : index
    %c0_72 = arith.constant 0 : index
    %88 = vector.load %arg4[%c0_70, %c0_71, %c0_72] : memref<1x8x1xf32, #tpu.memory_space<vmem>>, vector<1x8x1xf32>
    %89 = vector.shape_cast %88 : vector<1x8x1xf32> to vector<8x1xf32>
    %90 = vector.broadcast %89 : vector<8x1xf32> to vector<8x128xf32>
    %91 = arith.mulf %87, %90 : vector<8x128xf32>
    %c0_73 = arith.constant 0 : index
    %c0_74 = arith.constant 0 : index
    %c0_75 = arith.constant 0 : index
    %92 = vector.load %arg7[%c0_73, %c0_74, %c0_75] : memref<1x8x128xf32, #tpu.memory_space<vmem>>, vector<1x8x128xf32>
    %93 = vector.shape_cast %92 : vector<1x8x128xf32> to vector<8x128xf32>
    %94 = vector.shape_cast %91 : vector<8x128xf32> to vector<1x8x128xf32>
    tpu.vector_store %arg7[%c0_73, %c0_74, %c0_75], %94 {strides = array<i32>} : memref<1x8x128xf32, #tpu.memory_space<vmem>>, vector<1x8x128xf32>,
    %95 = arith.index_cast %arg0 : i32 to index
    %96 = memref.load %arg2[%95] : memref<2xi32, #tpu.memory_space<smem>>
    %97 = tpu.iota {dimensions = array<i32: 0>} : vector<8x1xi32>
    %98 = vector.broadcast %96 : i32 to vector<8x1xi32>
    %99 = arith.cmpi eq, %97, %98 : vector<8x1xi32>
    %100 = arith.extui %99 : vector<8x1xi1> to vector<8x1xi32>
    %101 = arith.sitofp %100 : vector<8x1xi32> to vector<8x1xf32>
    %102 = vector.broadcast %101 : vector<8x1xf32> to vector<8x128xf32>
    %103 = arith.mulf %102, %91 : vector<8x128xf32>
    %cst_76 = arith.constant dense<0.000000e+00> : vector<128xf32>
    %104 = vector.multi_reduction <add>, %103, %cst_76 [0] : vector<8x128xf32> to vector<128xf32>
    %105 = vector.shape_cast %104 : vector<128xf32> to vector<1x128xf32>
    %c0_77 = arith.constant 0 : index
    %c0_78 = arith.constant 0 : index
    %c0_79 = arith.constant 0 : index
    %106 = vector.load %arg8[%c0_77, %c0_78, %c0_79] : memref<1x2x128xf32, #tpu.memory_space<vmem>>, vector<1x1x128xf32>
    %107 = vector.shape_cast %106 : vector<1x1x128xf32> to vector<1x128xf32>
    %108 = vector.shape_cast %105 : vector<1x128xf32> to vector<1x1x128xf32>
    tpu.vector_store %arg8[%c0_77, %c0_78, %c0_79], %108 {strides = array<i32>} : memref<1x2x128xf32, #tpu.memory_space<vmem>>, vector<1x1x128xf32>,
    %109 = vector.extract_strided_slice %91 {offsets = [0, 0], sizes = [1, 128], strides = [1, 1]} : vector<8x128xf32> to vector<1x128xf32>
    %c0_80 = arith.constant 0 : index
    %c1_81 = arith.constant 1 : index
    %c0_82 = arith.constant 0 : index
    %110 = vector.load %arg8[%c0_80, %c1_81, %c0_82] : memref<1x2x128xf32, #tpu.memory_space<vmem>>, vector<1x1x128xf32>
    %111 = vector.shape_cast %110 : vector<1x1x128xf32> to vector<1x128xf32>
    %112 = vector.shape_cast %109 : vector<1x128xf32> to vector<1x1x128xf32>
    tpu.vector_store %arg8[%c0_80, %c1_81, %c0_82], %112 {strides = array<i32>} : memref<1x2x128xf32, #tpu.memory_space<vmem>>, vector<1x1x128xf32>,
    return
  }
  func.func @transform_1(%arg0: i32, %arg1: memref<2x8xi32, #tpu.memory_space<smem>>, %arg2: memref<2xi32, #tpu.memory_space<smem>>) -> (i32, i32, i32) {
    %c0_i32 = arith.constant 0 : i32
    %c0_i32_0 = arith.constant 0 : i32
    %c0_i32_1 = arith.constant 0 : i32
    return %arg0, %c0_i32, %c0_i32_0 : i32, i32, i32
  }
  func.func @transform_2(%arg0: i32, %arg1: memref<2x8xi32, #tpu.memory_space<smem>>, %arg2: memref<2xi32, #tpu.memory_space<smem>>) -> (i32, i32) {
    %c0_i32 = arith.constant 0 : i32
    %c0_i32_0 = arith.constant 0 : i32
    %c0_i32_1 = arith.constant 0 : i32
    return %c0_i32, %c0_i32_0 : i32, i32
  }
  func.func @transform_3(%arg0: i32, %arg1: memref<2x8xi32, #tpu.memory_space<smem>>, %arg2: memref<2xi32, #tpu.memory_space<smem>>) -> (i32, i32) {
    %c0_i32 = arith.constant 0 : i32
    %c0_i32_0 = arith.constant 0 : i32
    %c0_i32_1 = arith.constant 0 : i32
    return %c0_i32, %c0_i32_0 : i32, i32
  }
  func.func @transform_4(%arg0: i32, %arg1: memref<2x8xi32, #tpu.memory_space<smem>>, %arg2: memref<2xi32, #tpu.memory_space<smem>>) -> (i32, i32, i32) {
    %c0_i32 = arith.constant 0 : i32
    %c0_i32_0 = arith.constant 0 : i32
    %c0_i32_1 = arith.constant 0 : i32
    return %arg0, %c0_i32, %c0_i32_0 : i32, i32, i32
  }
  func.func @transform_5(%arg0: i32, %arg1: memref<2x8xi32, #tpu.memory_space<smem>>, %arg2: memref<2xi32, #tpu.memory_space<smem>>) -> (i32, i32, i32) {
    %c0_i32 = arith.constant 0 : i32
    %c0_i32_0 = arith.constant 0 : i32
    %c0_i32_1 = arith.constant 0 : i32
    return %arg0, %c0_i32, %c0_i32_0 : i32, i32, i32
  }
}

</mosaic_0001>

<llo_original>
// kernel: tpu_custom_call.1
$region0: #{tpu_custom_call.1}
  #allocation0 [shape = 'u32[]', space=smem, size = 0x4, offset = 0x4, fixed_abs, tag = 'smem constant byte address 0x4 - core index']
  #allocation1 [shape = 'u32[72,128]{1,0:T(1,128)}', space=vmem, size = 0x9000, scoped, tag = 'internal scratch']
  #allocation2 [shape = 'f32[8,128]{1,0:T(8,128)}', space=vmem, size = 0x1000, scoped, tag = 'scratch operand']
  #allocation3 [shape = 's32[8]{0}', space=sflag, size = 0x20, scoped, tag = 'scratch operand']
  #allocation4 [shape = 's32[1]{0}', space=sflag, size = 0x4, scoped, tag = 'scoped memory for tpu_custom_call.1']
  #allocation5 [shape = 'u8[1024]{0}', space=smem, size = 0x400, scoped, tag = 'prefetched SMEM operand 0']
  #allocation6 [shape = 'u8[512]{0}', space=smem, size = 0x200, scoped, tag = 'prefetched SMEM operand 1']
  #allocation13 [shape = 's32[]', space=sflag, size = 0x4, offset = 0, fixed_abs, tag = 'sflag constant byte address 0x0 - dummy sync flag']
  #allocation14 [shape = 's32[]', space=sflag, size = 0x4, offset = 0, fixed_abs, tag = 'sflag constant byte address 0x0 - dummy sync flag']
  #allocation15 [shape = 'u32[]', space=smem, size = 0x4, offset = 0x44, fixed_abs, tag = 'smem constant byte address 0x44 - assertion arg 0']
  #allocation16 [shape = 'u32[]', space=smem, size = 0x4, offset = 0x48, fixed_abs, tag = 'smem constant byte address 0x48 - assertion arg 1']
  #allocation17 [shape = 's32[]', space=sflag, size = 0x4, offset = 0, fixed_abs, tag = 'sflag constant byte address 0x0 - dummy sync flag']
  #allocation18 [shape = 's32[]', space=sflag, size = 0x4, offset = 0, fixed_abs, tag = 'sflag constant byte address 0x0 - dummy sync flag']
  #allocation19 [shape = 's32[]', space=sflag, size = 0x4, offset = 0, fixed_abs, tag = 'sflag constant byte address 0x0 - dummy sync flag']
  #allocation20 [shape = 's32[]', space=sflag, size = 0x4, offset = 0, fixed_abs, tag = 'sflag constant byte address 0x0 - dummy sync flag']
  #allocation21 [shape = 's32[]', space=sflag, size = 0x4, offset = 0, fixed_abs, tag = 'sflag constant byte address 0x0 - dummy sync flag']
  #allocation22 [shape = 's32[]', space=sflag, size = 0x4, offset = 0, fixed_abs, tag = 'sflag constant byte address 0x0 - dummy sync flag']
  #allocation23 [shape = 's32[]', space=sflag, size = 0x4, offset = 0, fixed_abs, tag = 'sflag constant byte address 0x0 - dummy sync flag']
  #allocation24 [shape = 's32[]', space=sflag, size = 0x4, offset = 0, fixed_abs, tag = 'sflag constant byte address 0x0 - dummy sync flag']
  #allocation25 [shape = 's32[]', space=sflag, size = 0x4, offset = 0, fixed_abs, tag = 'sflag constant byte address 0x0 - dummy sync flag']
  #allocation26 [shape = 's32[]', space=sflag, size = 0x4, offset = 0, fixed_abs, tag = 'sflag constant byte address 0x0 - dummy sync flag']
  #allocation27 [shape = 's32[]', space=sflag, size = 0x4, offset = 0, fixed_abs, tag = 'sflag constant byte address 0x0 - dummy sync flag']
  #allocation28 [shape = 's32[]', space=sflag, size = 0x4, offset = 0, fixed_abs, tag = 'sflag constant byte address 0x0 - dummy sync flag']
  #allocation29 [shape = 's32[]', space=sflag, size = 0x4, offset = 0, fixed_abs, tag = 'sflag constant byte address 0x0 - dummy sync flag']
  #allocation30 [shape = 's32[]', space=sflag, size = 0x4, offset = 0, fixed_abs, tag = 'sflag constant byte address 0x0 - dummy sync flag']
  %s0 = inlined_call_operand.vmem [shape: s32[2,8], index: 0, kind: input, shape index: {}]
  %s1 = inlined_call_operand.vmem [shape: s32[2], index: 1, kind: input, shape index: {}]
  %s2 = inlined_call_operand.hbm [shape: f32[72,128], index: 2, kind: input, shape index: {}]
  %s3 = inlined_call_operand.vmem [shape: f32[2,8,1], index: 3, kind: input, shape index: {}]
  %s4 = inlined_call_operand.hbm [shape: bf16[128,128], index: 4, kind: input, shape index: {}]
  %s5 = inlined_call_operand.vmem [shape: f32[1,128], index: 5, kind: input, shape index: {}]
  %s6 = inlined_call_operand.hbm [shape: f32[2,8,128], index: 6, kind: output, shape index: {0}]
  %s7 = inlined_call_operand.hbm [shape: f32[2,2,128], index: 7, kind: output, shape index: {1}]
  %8 = xla_tuple %s6, %s7
  %s9 = sld [smem:[#allocation0]]
  $region89: #{tpu_custom_call.1} parent=0
    _
  %s11 = ssub.s32 1, %s9
  %s12 = scalar_select 0, %s11, %s9
  %s14 = sshll.u32 %s0, 4
  %s15 = int_to_ptr.vmem [resolvable:$true] %s14
  %17 = dma.vmem_to_smem %s15, 32, [#allocation5], [#allocation4]
  %s19 = sshll.u32 %s1, 4
  %s20 = int_to_ptr.vmem [resolvable:$true] %s19
  %22 = dma.vmem_to_smem %s20, 16, [#allocation6], [#allocation4]
  %24 = dma.done [#allocation4], 48
  %25 = sfence
  $region1: #{tpu_custom_call.1} parent=0
    #allocation7 [shape = 'u8[32768]{0}', space=vmem, size = 0x8000, scoped, tag = 'input window, operand 4, single buffered']
    #allocation8 [shape = 's32[2]{0}', space=sflag, size = 0x8, scoped, tag = 'scoped memory for tpu_custom_call.1']
    #allocation9 [shape = 's32[2]{0}', space=sflag, size = 0x8, scoped, tag = 'scoped memory for tpu_custom_call.1']
    #allocation10 [shape = 'u8[8192]{0}', space=vmem, size = 0x2000, scoped, tag = 'output window, operand 0']
    #allocation11 [shape = 'u8[2048]{0}', space=vmem, size = 0x800, scoped, tag = 'output window, operand 1']
    #allocation12 [shape = 's32[2]{0}', space=sflag, size = 0x8, scoped, tag = 'scoped memory for tpu_custom_call.1']
    %26 = vsyncpa [#allocation8], 0
    %27 = vsyncpa [#allocation9], 0
    %s28 = scalar_lea.sflag [#allocation9], 1
    %29 = vsyncpa %s28, 0
    %30 = vsyncpa [#allocation12], 0
    %s31 = scalar_lea.sflag [#allocation12], 1
    %32 = vsyncpa %s31, 0
    loop: start=0, step=1, limit=4
    $region2: #{tpu_custom_call.1} parent=1 // loop_pre_header
      _
    $region3: #{tpu_custom_call.1} parent=1 // loop_header
      %s34 = sphi 0, %s38
      %p35 = scmp.ge.s32.totalorder %s34, 4
      %s44 = sphi 0, %s46
      %s47 = sphi 0, %s44
      %s48 = sphi 0, %s47
      %s64 = sphi 0, %s48
      %s68 = sphi 0, %s68
      %s70 = sphi 0, %s68
      %s71 = sphi 0, %s70
      %s85 = sphi 0, %s71
      %s89 = sphi 0, %s89
      %s91 = sphi 0, %s89
      %s92 = sphi 0, %s91
      %s106 = sphi 0, %s92
      %s112 = sphi 0, %s114
      %s115 = sphi 0, %s112
      %s116 = sphi 0, %s115
      %s132 = sphi 0, %s116
      %s138 = sphi 0, %s140
      %s141 = sphi 0, %s138
      %s142 = sphi 0, %s141
      %s158 = sphi 0, %s142
    $region4: #{tpu_custom_call.1} parent=1 // loop_header_branch
      %37 = sbr.rel (%p35) target = $region8
    $region5: #{tpu_custom_call.1} parent=1 // loop_body
      %s39 = ssub.s32 %s34, 1
      %s40 = ssub.s32 %s34, 2
      %s41 = sadd.s32 %s34, 1
      %s42 = ssub.s32 %s34, %s41
      %p43 = scmp.eq.s32.totalorder %s42, 0
      %s45 = sadd.s32 %s44, 1
      %s46 = scalar_select %p43, %s44, %s45
      %p49 = pneg %p43
      %p50 = scmp.eq.s32.totalorder %s34, 1
      %p51 = por %p49, %p50
      %p52 = scmp.ne.s32.totalorder %s44, %s47
      %p53 = scmp.eq.s32.totalorder %s34, 0
      %p54 = por %p52, %p53
      %p55 = scmp.ne.s32.totalorder %s44, %s47
      %p56 = scmp.eq.s32.totalorder %s39, 1
      %p57 = por %p55, %p56
      %p58 = scmp.ne.s32.totalorder %s47, %s48
      %p59 = scmp.eq.s32.totalorder %s39, 0
      %p60 = por %p58, %p59
      %p61 = scmp.ne.s32.totalorder %s47, %s48
      %p62 = scmp.eq.s32.totalorder %s40, 1
      %p63 = por %p61, %p62
      %p65 = scmp.ne.s32.totalorder %s48, %s64
      %p66 = scmp.eq.s32.totalorder %s40, 0
      %p67 = por %p65, %p66
      %s69 = sadd.s32 %s68, 1
      %p72 = scmp.eq.s32.totalorder %s34, 1
      %p73 = scmp.ne.s32.totalorder %s68, %s70
      %p74 = scmp.eq.s32.totalorder %s34, 0
      %p75 = por %p73, %p74
      %p76 = scmp.ne.s32.totalorder %s68, %s70
      %p77 = scmp.eq.s32.totalorder %s39, 1
      %p78 = por %p76, %p77
      %p79 = scmp.ne.s32.totalorder %s70, %s71
      %p80 = scmp.eq.s32.totalorder %s39, 0
      %p81 = por %p79, %p80
      %p82 = scmp.ne.s32.totalorder %s70, %s71
      %p83 = scmp.eq.s32.totalorder %s40, 1
      %p84 = por %p82, %p83
      %p86 = scmp.ne.s32.totalorder %s71, %s85
      %p87 = scmp.eq.s32.totalorder %s40, 0
      %p88 = por %p86, %p87
      %s90 = sadd.s32 %s89, 1
      %p93 = scmp.eq.s32.totalorder %s34, 1
      %p94 = scmp.ne.s32.totalorder %s89, %s91
      %p95 = scmp.eq.s32.totalorder %s34, 0
      %p96 = por %p94, %p95
      %p97 = scmp.ne.s32.totalorder %s89, %s91
      %p98 = scmp.eq.s32.totalorder %s39, 1
      %p99 = por %p97, %p98
      %p100 = scmp.ne.s32.totalorder %s91, %s92
      %p101 = scmp.eq.s32.totalorder %s39, 0
      %p102 = por %p100, %p101
      %p103 = scmp.ne.s32.totalorder %s91, %s92
      %p104 = scmp.eq.s32.totalorder %s40, 1
      %p105 = por %p103, %p104
      %p107 = scmp.ne.s32.totalorder %s92, %s106
      %p108 = scmp.eq.s32.totalorder %s40, 0
      %p109 = por %p107, %p108
      %s110 = ssub.s32 %s34, %s41
      %p111 = scmp.eq.s32.totalorder %s110, 0
      %s113 = sadd.s32 %s112, 1
      %s114 = scalar_select %p111, %s112, %s113
      %p117 = pneg %p111
      %p118 = scmp.eq.s32.totalorder %s34, 1
      %p119 = por %p117, %p118
      %p120 = scmp.ne.s32.totalorder %s112, %s115
      %p121 = scmp.eq.s32.totalorder %s34, 0
      %p122 = por %p120, %p121
      %p123 = scmp.ne.s32.totalorder %s112, %s115
      %p124 = scmp.eq.s32.totalorder %s39, 1
      %p125 = por %p123, %p124
      %p126 = scmp.ne.s32.totalorder %s115, %s116
      %p127 = scmp.eq.s32.totalorder %s39, 0
      %p128 = por %p126, %p127
      %p129 = scmp.ne.s32.totalorder %s115, %s116
      %p130 = scmp.eq.s32.totalorder %s40, 1
      %p131 = por %p129, %p130
      %p133 = scmp.ne.s32.totalorder %s116, %s132
      %p134 = scmp.eq.s32.totalorder %s40, 0
      %p135 = por %p133, %p134
      %s136 = ssub.s32 %s34, %s41
      %p137 = scmp.eq.s32.totalorder %s136, 0
      %s139 = sadd.s32 %s138, 1
      %s140 = scalar_select %p137, %s138, %s139
      %p143 = pneg %p137
      %p144 = scmp.eq.s32.totalorder %s34, 1
      %p145 = por %p143, %p144
      %p146 = scmp.ne.s32.totalorder %s138, %s141
      %p147 = scmp.eq.s32.totalorder %s34, 0
      %p148 = por %p146, %p147
      %p149 = scmp.ne.s32.totalorder %s138, %s141
      %p150 = scmp.eq.s32.totalorder %s39, 1
      %p151 = por %p149, %p150
      %p152 = scmp.ne.s32.totalorder %s141, %s142
      %p153 = scmp.eq.s32.totalorder %s39, 0
      %p154 = por %p152, %p153
      %p155 = scmp.ne.s32.totalorder %s141, %s142
      %p156 = scmp.eq.s32.totalorder %s40, 1
      %p157 = por %p155, %p156
      %p159 = scmp.ne.s32.totalorder %s142, %s158
      %p160 = scmp.eq.s32.totalorder %s40, 0
      %p161 = por %p159, %p160
      %p162 = scmp.le.s32.totalorder 1, %s34
      %p163 = scmp.lt.s32.totalorder %s34, 3
      %p164 = pnand %p162, %p163
      %p165 = pneg %p164
      // Predicated region
      $region9: #{tpu_custom_call.1} parent=5 // pred_check
        _
      $region10: #{tpu_custom_call.1} parent=5 // pred_check_branch
        %167 = sbr.rel (%p164) target = $region12
      $region11: #{tpu_custom_call.1} parent=5 // pred_region
        %s168 = ssub.s32 %s34, 1
        // Predicated region
        $region13: #{tpu_custom_call.1} parent=11 // pred_check
          %p169 = pneg %p81
        $region14: #{tpu_custom_call.1} parent=11 // pred_check_branch
          %171 = sbr.rel (%p169) target = $region16
        $region15: #{tpu_custom_call.1} parent=11 // pred_region
          %173 = vsyncadd [#allocation8], 0
          %s174 = sshll.u32 %s4, 4
          %s175 = int_to_ptr.hbm [resolvable:$true] %s174
          %s176 = sshll.u32 [#allocation7], 4
          %s177 = int_to_ptr.vmem [resolvable:$true] %s176
          %182 = dma.hbm_to_vmem [thread:$0]  %s175, 1024, %s177, [#allocation8], 64, 64, 4
        $region16: #{tpu_custom_call.1} parent=11 // pred_fallthru
          _
        // Predicated region
        $region17: #{tpu_custom_call.1} parent=11 // pred_check
          %p183 = pneg %p102
        $region18: #{tpu_custom_call.1} parent=11 // pred_check_branch
          %185 = sbr.rel (%p183) target = $region20
        $region19: #{tpu_custom_call.1} parent=11 // pred_region
          _
        $region20: #{tpu_custom_call.1} parent=11 // pred_fallthru
          _
      $region12: #{tpu_custom_call.1} parent=5 // pred_fallthru
        _
      %p186 = scmp.lt.s32.totalorder %s34, 2
      // Predicated region
      $region21: #{tpu_custom_call.1} parent=5 // pred_check
        %p187 = pneg %p186
      $region22: #{tpu_custom_call.1} parent=5 // pred_check_branch
        %189 = sbr.rel (%p187) target = $region24
      $region23: #{tpu_custom_call.1} parent=5 // pred_region
        // Predicated region
        $region25: #{tpu_custom_call.1} parent=23 // pred_check
          %p190 = pneg %p54
        $region26: #{tpu_custom_call.1} parent=23 // pred_check_branch
          %192 = sbr.rel (%p190) target = $region28
        $region27: #{tpu_custom_call.1} parent=23 // pred_region
          %p193 = scmp.lt.s32.totalorder %s34, 1
          %s194 = scalar_select %p193, %s34, 1
          %s195 = smul.addr %s194, 8
          %s196 = scalar_lea.vmem %s3, %s195
        $region28: #{tpu_custom_call.1} parent=23 // pred_fallthru
          _
      $region24: #{tpu_custom_call.1} parent=5 // pred_fallthru
        _
      %p197 = scmp.le.s32.totalorder 1, %s34
      %p198 = scmp.lt.s32.totalorder %s34, 3
      %p199 = pnand %p197, %p198
      %p200 = pneg %p199
      // Predicated region
      $region29: #{tpu_custom_call.1} parent=5 // pred_check
        _
      $region30: #{tpu_custom_call.1} parent=5 // pred_check_branch
        %202 = sbr.rel (%p199) target = $region32
      $region31: #{tpu_custom_call.1} parent=5 // pred_region
        %s203 = ssub.s32 %s34, 1
        // Predicated region
        $region33: #{tpu_custom_call.1} parent=31 // pred_check
          %p204 = pneg %p81
        $region34: #{tpu_custom_call.1} parent=31 // pred_check_branch
          %206 = sbr.rel (%p204) target = $region36
        $region35: #{tpu_custom_call.1} parent=31 // pred_region
          %208 = dma.done [#allocation8], 1024
        $region36: #{tpu_custom_call.1} parent=31 // pred_fallthru
          _
        %p209 = scmp.lt.s32.totalorder %s39, 1
        %s210 = scalar_select %p209, %s39, 1
        %s211 = smul.addr %s210, 8
        %s212 = scalar_lea.vmem %s3, %s211
        %p213 = pneg %p60
        %p214 = pneg %p57
        %p215 = pneg %p81
        %p216 = pneg %p78
        %p217 = pneg %p102
        %p218 = pneg %p99
        %p219 = pneg %p128
        %p220 = pneg %p125
        %s221 = sand.u32 %s115, 1
        %s222 = scalar_lea.sflag [#allocation9], %s221
        %s223 = sand.u32 %s115, 1
        %s224 = smul.addr %s223, 8
        %s225 = scalar_lea.vmem [#allocation10], %s224
        %p226 = pneg %p154
        %p227 = pneg %p151
        %s228 = sand.u32 %s141, 1
        %s229 = scalar_lea.sflag [#allocation12], %s228
        %s230 = sand.u32 %s141, 1
        %s231 = smul.addr %s230, 2
        %s232 = scalar_lea.vmem [#allocation11], %s231
        %p233 = scmp.lt.s32.totalorder %s39, 1
        %s234 = scalar_select %p233, %s39, 1
        %s235 = smul.addr %s234, 8
        %s236 = scalar_lea.vmem %s3, %s235
        %s237 = smul.u32 %s39, 128
        %s238 = sld [smem:[#allocation5 + %s237]]
        %s239 = scalar_lea.hbm %s2, %s238
        // Predicated region
        $region37: #{tpu_custom_call.1} parent=31 // pred_check
          _
        $region38: #{tpu_custom_call.1} parent=31 // pred_check_branch
          %241 = sbr.rel target = $region40
        $region39: #{tpu_custom_call.1} parent=31 // pred_region
          %242 = sst [smem:[#allocation15]] [#allocation14]
          %243 = sst [smem:[#allocation16]] [#allocation13]
        $region40: #{tpu_custom_call.1} parent=31 // pred_fallthru
          _
        %245 = shalt.err (0)
        %s247 = sshll.u32 %s239, 4
        %s248 = int_to_ptr.hbm [resolvable:$true] %s247
        %s249 = sshll.u32 [#allocation2], 4
        %s250 = int_to_ptr.vmem [resolvable:$true] %s249
        %252 = dma.hbm_to_vmem [thread:$0]  %s248, 16, %s250, [#allocation3]
        %s253 = sadd.s32 %s237, 1
        %s254 = sld [smem:[#allocation5 + %s253]]
        %s255 = scalar_lea.hbm %s2, %s254
        %s256 = scalar_lea.vmem [#allocation2], 1
        %s257 = scalar_lea.sflag [#allocation3], 1
        // Predicated region
        $region41: #{tpu_custom_call.1} parent=31 // pred_check
          _
        $region42: #{tpu_custom_call.1} parent=31 // pred_check_branch
          %259 = sbr.rel target = $region44
        $region43: #{tpu_custom_call.1} parent=31 // pred_region
          %260 = sst [smem:[#allocation15]] [#allocation18]
          %261 = sst [smem:[#allocation16]] [#allocation17]
        $region44: #{tpu_custom_call.1} parent=31 // pred_fallthru
          _
        %263 = shalt.err (0)
        %s265 = sshll.u32 %s255, 4
        %s266 = int_to_ptr.hbm [resolvable:$true] %s265
        %s267 = sshll.u32 %s256, 4
        %s268 = int_to_ptr.vmem [resolvable:$true] %s267
        %270 = dma.hbm_to_vmem [thread:$0]  %s266, 16, %s268, %s257
        %s271 = sadd.s32 %s237, 2
        %s272 = sld [smem:[#allocation5 + %s271]]
        %s273 = scalar_lea.hbm %s2, %s272
        %s274 = scalar_lea.vmem [#allocation2], 2
        %s275 = scalar_lea.sflag [#allocation3], 2
        // Predicated region
        $region45: #{tpu_custom_call.1} parent=31 // pred_check
          _
        $region46: #{tpu_custom_call.1} parent=31 // pred_check_branch
          %277 = sbr.rel target = $region48
        $region47: #{tpu_custom_call.1} parent=31 // pred_region
          %278 = sst [smem:[#allocation15]] [#allocation20]
          %279 = sst [smem:[#allocation16]] [#allocation19]
        $region48: #{tpu_custom_call.1} parent=31 // pred_fallthru
          _
        %281 = shalt.err (0)
        %s283 = sshll.u32 %s273, 4
        %s284 = int_to_ptr.hbm [resolvable:$true] %s283
        %s285 = sshll.u32 %s274, 4
        %s286 = int_to_ptr.vmem [resolvable:$true] %s285
        %288 = dma.hbm_to_vmem [thread:$0]  %s284, 16, %s286, %s275
        %s289 = sadd.s32 %s237, 3
        %s290 = sld [smem:[#allocation5 + %s289]]
        %s291 = scalar_lea.hbm %s2, %s290
        %s292 = scalar_lea.vmem [#allocation2], 3
        %s293 = scalar_lea.sflag [#allocation3], 3
        // Predicated region
        $region49: #{tpu_custom_call.1} parent=31 // pred_check
          _
        $region50: #{tpu_custom_call.1} parent=31 // pred_check_branch
          %295 = sbr.rel target = $region52
        $region51: #{tpu_custom_call.1} parent=31 // pred_region
          %296 = sst [smem:[#allocation15]] [#allocation22]
          %297 = sst [smem:[#allocation16]] [#allocation21]
        $region52: #{tpu_custom_call.1} parent=31 // pred_fallthru
          _
        %299 = shalt.err (0)
        %s301 = sshll.u32 %s291, 4
        %s302 = int_to_ptr.hbm [resolvable:$true] %s301
        %s303 = sshll.u32 %s292, 4
        %s304 = int_to_ptr.vmem [resolvable:$true] %s303
        %306 = dma.hbm_to_vmem [thread:$0]  %s302, 16, %s304, %s293
        %s307 = sadd.s32 %s237, 4
        %s308 = sld [smem:[#allocation5 + %s307]]
        %s309 = scalar_lea.hbm %s2, %s308
        %s310 = scalar_lea.vmem [#allocation2], 4
        %s311 = scalar_lea.sflag [#allocation3], 4
        // Predicated region
        $region53: #{tpu_custom_call.1} parent=31 // pred_check
          _
        $region54: #{tpu_custom_call.1} parent=31 // pred_check_branch
          %313 = sbr.rel target = $region56
        $region55: #{tpu_custom_call.1} parent=31 // pred_region
          %314 = sst [smem:[#allocation15]] [#allocation24]
          %315 = sst [smem:[#allocation16]] [#allocation23]
        $region56: #{tpu_custom_call.1} parent=31 // pred_fallthru
          _
        %317 = shalt.err (0)
        %s319 = sshll.u32 %s309, 4
        %s320 = int_to_ptr.hbm [resolvable:$true] %s319
        %s321 = sshll.u32 %s310, 4
        %s322 = int_to_ptr.vmem [resolvable:$true] %s321
        %324 = dma.hbm_to_vmem [thread:$0]  %s320, 16, %s322, %s311
        %s325 = sadd.s32 %s237, 5
        %s326 = sld [smem:[#allocation5 + %s325]]
        %s327 = scalar_lea.hbm %s2, %s326
        %s328 = scalar_lea.vmem [#allocation2], 5
        %s329 = scalar_lea.sflag [#allocation3], 5
        // Predicated region
        $region57: #{tpu_custom_call.1} parent=31 // pred_check
          _
        $region58: #{tpu_custom_call.1} parent=31 // pred_check_branch
          %331 = sbr.rel target = $region60
        $region59: #{tpu_custom_call.1} parent=31 // pred_region
          %332 = sst [smem:[#allocation15]] [#allocation26]
          %333 = sst [smem:[#allocation16]] [#allocation25]
        $region60: #{tpu_custom_call.1} parent=31 // pred_fallthru
          _
        %335 = shalt.err (0)
        %s337 = sshll.u32 %s327, 4
        %s338 = int_to_ptr.hbm [resolvable:$true] %s337
        %s339 = sshll.u32 %s328, 4
        %s340 = int_to_ptr.vmem [resolvable:$true] %s339
        %342 = dma.hbm_to_vmem [thread:$0]  %s338, 16, %s340, %s329
        %s343 = sadd.s32 %s237, 6
        %s344 = sld [smem:[#allocation5 + %s343]]
        %s345 = scalar_lea.hbm %s2, %s344
        %s346 = scalar_lea.vmem [#allocation2], 6
        %s347 = scalar_lea.sflag [#allocation3], 6
        // Predicated region
        $region61: #{tpu_custom_call.1} parent=31 // pred_check
          _
        $region62: #{tpu_custom_call.1} parent=31 // pred_check_branch
          %349 = sbr.rel target = $region64
        $region63: #{tpu_custom_call.1} parent=31 // pred_region
          %350 = sst [smem:[#allocation15]] [#allocation28]
          %351 = sst [smem:[#allocation16]] [#allocation27]
        $region64: #{tpu_custom_call.1} parent=31 // pred_fallthru
          _
        %353 = shalt.err (0)
        %s355 = sshll.u32 %s345, 4
        %s356 = int_to_ptr.hbm [resolvable:$true] %s355
        %s357 = sshll.u32 %s346, 4
        %s358 = int_to_ptr.vmem [resolvable:$true] %s357
        %360 = dma.hbm_to_vmem [thread:$0]  %s356, 16, %s358, %s347
        %s361 = sadd.s32 %s237, 7
        %s362 = sld [smem:[#allocation5 + %s361]]
        %s363 = scalar_lea.hbm %s2, %s362
        %s364 = scalar_lea.vmem [#allocation2], 7
        %s365 = scalar_lea.sflag [#allocation3], 7
        // Predicated region
        $region65: #{tpu_custom_call.1} parent=31 // pred_check
          _
        $region66: #{tpu_custom_call.1} parent=31 // pred_check_branch
          %367 = sbr.rel target = $region68
        $region67: #{tpu_custom_call.1} parent=31 // pred_region
          %368 = sst [smem:[#allocation15]] [#allocation30]
          %369 = sst [smem:[#allocation16]] [#allocation29]
        $region68: #{tpu_custom_call.1} parent=31 // pred_fallthru
          _
        %371 = shalt.err (0)
        %s373 = sshll.u32 %s363, 4
        %s374 = int_to_ptr.hbm [resolvable:$true] %s373
        %s375 = sshll.u32 %s364, 4
        %s376 = int_to_ptr.vmem [resolvable:$true] %s375
        %378 = dma.hbm_to_vmem [thread:$0]  %s374, 16, %s376, %s365
        %s379 = smul.u32 1, 1
        %s380 = sshll.u32 %s379, 4
        %381 = dma.done [#allocation3], %s380
        %s382 = sshll.u32 %s379, 4
        %383 = dma.done %s257, %s382
        %s384 = sshll.u32 %s379, 4
        %385 = dma.done %s275, %s384
        %s386 = sshll.u32 %s379, 4
        %387 = dma.done %s293, %s386
        %s388 = sshll.u32 %s379, 4
        %389 = dma.done %s311, %s388
        %s390 = sshll.u32 %s379, 4
        %391 = dma.done %s329, %s390
        %s392 = sshll.u32 %s379, 4
        %393 = dma.done %s347, %s392
        %s394 = sshll.u32 %s379, 4
        %395 = dma.done %s365, %s394
        %v396 = vld [vmem:[#allocation2] sm:$0xff]
        %v397 = vpack.c.bf16 %v396, %v396
        %v398 = vld [vmem:[#allocation7] sm:$0xf]
        %v399 = vld [vmem:[#allocation7 + $0x4] sm:$0xf]
        %v400 = vld [vmem:[#allocation7 + $0x8] sm:$0xf]
        %v401 = vld [vmem:[#allocation7 + $0xc] sm:$0xf]
        %v402 = vld [vmem:[#allocation7 + $0x10] sm:$0xf]
        %v403 = vld [vmem:[#allocation7 + $0x14] sm:$0xf]
        %v404 = vld [vmem:[#allocation7 + $0x18] sm:$0xf]
        %v405 = vld [vmem:[#allocation7 + $0x1c] sm:$0xf]
        %v406 = vld [vmem:[#allocation7 + $0x20] sm:$0xf]
        %v407 = vld [vmem:[#allocation7 + $0x24] sm:$0xf]
        %v408 = vld [vmem:[#allocation7 + $0x28] sm:$0xf]
        %v409 = vld [vmem:[#allocation7 + $0x2c] sm:$0xf]
        %v410 = vld [vmem:[#allocation7 + $0x30] sm:$0xf]
        %v411 = vld [vmem:[#allocation7 + $0x34] sm:$0xf]
        %v412 = vld [vmem:[#allocation7 + $0x38] sm:$0xf]
        %v413 = vld [vmem:[#allocation7 + $0x3c] sm:$0xf]
        %v414 = vld [vmem:[%s5] sm:$0x1]
        %v416 = vperm.slane %v414, 0
        %v434 = vunpack.c.l.b16 %v398
        %v435 = vunpack.c.l.b16 %v399
        %v436 = vunpack.c.l.b16 %v400
        %v437 = vunpack.c.l.b16 %v401
        %v438 = vunpack.c.l.b16 %v402
        %v439 = vunpack.c.l.b16 %v403
        %v440 = vunpack.c.l.b16 %v404
        %v441 = vunpack.c.l.b16 %v405
        %v442 = vunpack.c.l.b16 %v406
        %v443 = vunpack.c.l.b16 %v407
        %v444 = vunpack.c.l.b16 %v408
        %v445 = vunpack.c.l.b16 %v409
        %v446 = vunpack.c.l.b16 %v410
        %v447 = vunpack.c.l.b16 %v411
        %v448 = vunpack.c.l.b16 %v412
        %v449 = vunpack.c.l.b16 %v413
        %v450 = vpack.c.b16 %v435, %v434
        %v451 = vpack.c.b16 %v437, %v436
        %v452 = vpack.c.b16 %v439, %v438
        %v453 = vpack.c.b16 %v441, %v440
        %v454 = vpack.c.b16 %v443, %v442
        %v455 = vpack.c.b16 %v445, %v444
        %v456 = vpack.c.b16 %v447, %v446
        %v457 = vpack.c.b16 %v449, %v448
        %466 = vmatpush.bf16.msra.mxu0 %v457
        %467 = vmatpush.bf16.msra.mxu0 %v456
        %468 = vmatpush.bf16.msra.mxu0 %v455
        %469 = vmatpush.bf16.msra.mxu0 %v454
        %470 = vmatpush.bf16.msra.mxu0 %v453
        %471 = vmatpush.bf16.msra.mxu0 %v452
        %472 = vmatpush.bf16.msra.mxu0 %v451
        %473 = vmatpush.bf16.msra.mxu0 %v450
        %474 = vmatmul.bf16.gmra.mxu0 %v397
        %v475 = vpop.f32.mrf.mxu0
        %v476 = vadd.f32 %v416, %v475
        %v477 = vpop.f32.mrf.mxu0
        %478 = vdwg.mxu0
        %v479 = vtanh.pop %v476
        %v480 = vld [vmem:[%s236] sm:$0xff]
        %482 = vset.pattern.permute.xlu0 0
        %483 = vperm.xlu0 %482, %v480
        %v484 = vpop.permute.xlu0 %483
        %v486 = vmul.f32 %v479, %v484
        %487 = vst [vmem:[%s225] sm:$0xff] %v486
        %s488 = sld [smem:[#allocation6 + %s39]]
        %v489 = vlaneseq
        %v490 = vshrl.u32 %v489, 7
        %v491 = vstv %s488
        %vm492 = vcmp.eq.s32.totalorder %v490, %v491
        %v493 = vsel %vm492, 1, 0
        %v494 = vcvt.s32.f32 %v493
        %v495 = vmul.f32 %v494, %v486
        %v496 = vrot.slane %v495, 4
        %v497 = vadd.f32 %v495, %v496
        %v498 = vrot.slane %v497, 2
        %v499 = vadd.f32 %v497, %v498
        %v500 = vrot.slane %v499, 1
        %v501 = vadd.f32 %v499, %v500
        %502 = vst [vmem:[%s232] sm:$0x1] %v501
        %503 = vst [vmem:[%s232 + $0x1] sm:$0x1] %v486
        %s504 = sand.u32 %s115, 1
        %s505 = scalar_lea.sflag [#allocation9], %s504
        %s506 = sand.u32 %s115, 1
        %s507 = smul.addr %s506, 8
        %s508 = scalar_lea.vmem [#allocation10], %s507
        %s509 = sand.u32 %s141, 1
        %s510 = scalar_lea.sflag [#allocation12], %s509
        %s511 = sand.u32 %s141, 1
        %s512 = smul.addr %s511, 2
        %s513 = scalar_lea.vmem [#allocation11], %s512
        // Predicated region
        $region69: #{tpu_custom_call.1} parent=31 // pred_check
          %p514 = pneg %p125
        $region70: #{tpu_custom_call.1} parent=31 // pred_check_branch
          %516 = sbr.rel (%p514) target = $region72
        $region71: #{tpu_custom_call.1} parent=31 // pred_region
          %518 = vsyncadd %s505, 0
          %s519 = smul.addr %s39, 8
          %s520 = scalar_lea.hbm %s6, %s519
          %s522 = sshll.u32 %s508, 4
          %s523 = int_to_ptr.vmem [resolvable:$true] %s522
          %s524 = sshll.u32 %s520, 4
          %s525 = int_to_ptr.hbm [resolvable:$true] %s524
          %527 = dma.vmem_to_hbm [thread:$0]  %s523, 128, %s525, %s505
        $region72: #{tpu_custom_call.1} parent=31 // pred_fallthru
          _
        // Predicated region
        $region73: #{tpu_custom_call.1} parent=31 // pred_check
          %p528 = pneg %p151
        $region74: #{tpu_custom_call.1} parent=31 // pred_check_branch
          %530 = sbr.rel (%p528) target = $region76
        $region75: #{tpu_custom_call.1} parent=31 // pred_region
          %532 = vsyncadd %s510, 0
          %s533 = smul.addr %s39, 2
          %s534 = scalar_lea.hbm %s7, %s533
          %s536 = sshll.u32 %s513, 4
          %s537 = int_to_ptr.vmem [resolvable:$true] %s536
          %s538 = sshll.u32 %s534, 4
          %s539 = int_to_ptr.hbm [resolvable:$true] %s538
          %541 = dma.vmem_to_hbm [thread:$0]  %s537, 32, %s539, %s510
        $region76: #{tpu_custom_call.1} parent=31 // pred_fallthru
          _
      $region32: #{tpu_custom_call.1} parent=5 // pred_fallthru
        _
      %p542 = scmp.le.s32.totalorder 2, %s34
      // Predicated region
      $region77: #{tpu_custom_call.1} parent=5 // pred_check
        %p543 = pneg %p542
      $region78: #{tpu_custom_call.1} parent=5 // pred_check_branch
        %545 = sbr.rel (%p543) target = $region80
      $region79: #{tpu_custom_call.1} parent=5 // pred_region
        %s546 = ssub.s32 %s34, 2
        // Predicated region
        $region81: #{tpu_custom_call.1} parent=79 // pred_check
          %p547 = pneg %p131
        $region82: #{tpu_custom_call.1} parent=79 // pred_check_branch
          %549 = sbr.rel (%p547) target = $region84
        $region83: #{tpu_custom_call.1} parent=79 // pred_region
          %s550 = sand.u32 %s116, 1
          %s551 = scalar_lea.sflag [#allocation9], %s550
          %s552 = sand.u32 %s116, 1
          %s553 = smul.addr %s552, 8
          %s554 = scalar_lea.vmem [#allocation10], %s553
          %556 = dma.done %s551, 128
        $region84: #{tpu_custom_call.1} parent=79 // pred_fallthru
          _
        // Predicated region
        $region85: #{tpu_custom_call.1} parent=79 // pred_check
          %p557 = pneg %p157
        $region86: #{tpu_custom_call.1} parent=79 // pred_check_branch
          %559 = sbr.rel (%p557) target = $region88
        $region87: #{tpu_custom_call.1} parent=79 // pred_region
          %s560 = sand.u32 %s142, 1
          %s561 = scalar_lea.sflag [#allocation12], %s560
          %s562 = sand.u32 %s142, 1
          %s563 = smul.addr %s562, 2
          %s564 = scalar_lea.vmem [#allocation11], %s563
          %566 = dma.done %s561, 32
        $region88: #{tpu_custom_call.1} parent=79 // pred_fallthru
          _
      $region80: #{tpu_custom_call.1} parent=5 // pred_fallthru
        _
    $region6: #{tpu_custom_call.1} parent=1 // loop_footer
      %s38 = sadd.s32 1, %s34
    $region7: #{tpu_custom_call.1} parent=1 // loop_footer_branch
      %33 = sbr.rel target = $region3
    $region8: #{tpu_custom_call.1} parent=1 // loop_exit
      _
    %567 = vsyncpa [#allocation8], 1
    %s568 = scalar_lea.sflag [#allocation8], 1
    %569 = vsyncpa %s568, 1
    %570 = vsyncpa [#allocation9], 1
    %s571 = scalar_lea.sflag [#allocation9], 1
    %572 = vsyncpa %s571, 1
    %573 = vsyncpa [#allocation12], 1
    %s574 = scalar_lea.sflag [#allocation12], 1
    %575 = vsyncpa %s574, 1
  %576 = vsyncmov [#allocation3]
  %s577 = vpop.sfrf %576
  %p578 = scmp.eq.s32.totalorder %s577, 0
  %p579 = pneg %p578
  %581 = shalt.err (%p579)
  %s582 = scalar_lea.sflag [#allocation3], 1
  %583 = vsyncmov %s582
  %s584 = vpop.sfrf %583
  %p585 = scmp.eq.s32.totalorder %s584, 0
  %p586 = pneg %p585
  %588 = shalt.err (%p586)
  %s589 = scalar_lea.sflag [#allocation3], 2
  %590 = vsyncmov %s589
  %s591 = vpop.sfrf %590
  %p592 = scmp.eq.s32.totalorder %s591, 0
  %p593 = pneg %p592
  %595 = shalt.err (%p593)
  %s596 = scalar_lea.sflag [#allocation3], 3
  %597 = vsyncmov %s596
  %s598 = vpop.sfrf %597
  %p599 = scmp.eq.s32.totalorder %s598, 0
  %p600 = pneg %p599
  %602 = shalt.err (%p600)
  %s603 = scalar_lea.sflag [#allocation3], 4
  %604 = vsyncmov %s603
  %s605 = vpop.sfrf %604
  %p606 = scmp.eq.s32.totalorder %s605, 0
  %p607 = pneg %p606
  %609 = shalt.err (%p607)
  %s610 = scalar_lea.sflag [#allocation3], 5
  %611 = vsyncmov %s610
  %s612 = vpop.sfrf %611
  %p613 = scmp.eq.s32.totalorder %s612, 0
  %p614 = pneg %p613
  %616 = shalt.err (%p614)
  %s617 = scalar_lea.sflag [#allocation3], 6
  %618 = vsyncmov %s617
  %s619 = vpop.sfrf %618
  %p620 = scmp.eq.s32.totalorder %s619, 0
  %p621 = pneg %p620
  %623 = shalt.err (%p621)
  %s624 = scalar_lea.sflag [#allocation3], 7
  %625 = vsyncmov %s624
  %s626 = vpop.sfrf %625
  %p627 = scmp.eq.s32.totalorder %s626, 0
  %p628 = pneg %p627
  %630 = shalt.err (%p628)

</llo_original>
